<compile_context>
chip_gen: v7x
topology: tpu7x:2x2x1
jax: 0.10.0
libtpu: 0.0.40
codegen_flags: <defaults>
</compile_context>

<pallas_src>
import jax
import jax.numpy as jnp
from jax.experimental import pallas as pl
from jax.experimental.pallas import tpu as pltpu

_LANE = 128
_SUBLANE = 8
_ITEM = 4  # float32 bytes
# Budget for all pipelined VMEM buffers of this kernel (fits every TPU gen).
_PIPELINE_VMEM_BUDGET = 14 << 20
# Hold B fully resident only while its (double-buffered) footprint is small.
_B_RESIDENT_MAX_BYTES = 4 << 20


def _cdiv(a: int, b: int) -> int:
    return -(-a // b)


def _round_up(x: int, m: int) -> int:
    return ((x + m - 1) // m) * m


def _vmem_tile_bytes(rows: int, cols: int) -> int:
    """f32 VMEM footprint of a (rows, cols) block after (8,128) layout padding."""
    return _round_up(rows, _SUBLANE) * _round_up(cols, _LANE) * _ITEM


def _choose_block(dim: int, target: int, granule: int) -> int:
    """Largest block <= ~target that is either the full dim or a multiple of
    `granule`, sized so the last (ragged) block is not mostly padding."""
    if dim <= target:
        return dim
    nblocks = _cdiv(dim, target)
    bs = _round_up(_cdiv(dim, nblocks), granule)
    if bs > target:  # only possible when target is not a multiple of granule
        nblocks += 1
        bs = _round_up(_cdiv(dim, nblocks), granule)
    return max(granule, bs)


def _plan(M: int, N: int, K: int):
    """Pick (tm, tn, b_resident, out_bufs) for out = A(M,K) @ B(K,N)."""
    b_resident_ok = 2 * _vmem_tile_bytes(K, N) <= _B_RESIDENT_MAX_BYTES

    # 1) Single full-array output block if it (double-buffered) fits the budget:
    #    no per-step overhead, no ragged/masked stores.
    single = 2 * (_vmem_tile_bytes(M, K) + _vmem_tile_bytes(K, N)
                  + _vmem_tile_bytes(M, N))
    if single <= _PIPELINE_VMEM_BUDGET:
        tm, tn = M, N
        # v7x megacore: give both TensorCores work once the output is big
        # enough to amortize the extra grid step (harmless on v5e/v6e).
        if M * N * _ITEM >= (1 << 20) and M >= 2 * _SUBLANE:
            tm = _round_up(_cdiv(M, 2), _SUBLANE)
        return tm, tn, True, 2

    # 2) Tiled path: prefer a wide lane (last) dim, then rows; stay in budget.
    tn = _choose_block(N, 2048, _LANE)
    tm = _choose_block(M, 512, _SUBLANE)
    out_bufs = 3

    def need(tm_, tn_, bufs):
        a = 2 * _vmem_tile_bytes(tm_, K)
        b = 2 * (_vmem_tile_bytes(K, N) if b_resident_ok
                 else _vmem_tile_bytes(K, tn_))
        o = bufs * _vmem_tile_bytes(tm_, tn_)
        return a + b + o

    while need(tm, tn, out_bufs) > _PIPELINE_VMEM_BUDGET and tm > _SUBLANE:
        tm = _choose_block(M, tm // 2, _SUBLANE)
    while need(tm, tn, out_bufs) > _PIPELINE_VMEM_BUDGET and tn > _LANE:
        tn = _choose_block(N, tn // 2, _LANE)
    if need(tm, tn, out_bufs) > _PIPELINE_VMEM_BUDGET:
        out_bufs = 2  # last resort: drop the third output buffer

    # Resident B + in-kernel column slicing is only safe when every slice
    # stays inside B's VMEM buffer (tn == N, or tn divides N exactly).
    b_resident = b_resident_ok and (tn == N or N % tn == 0)
    return tm, tn, b_resident, out_bufs


def _make_kernel(tn: int, slice_b: bool):
    def kernel(a_ref, b_ref, o_ref):
        if slice_b:
            # B is fully VMEM-resident; pick this output tile's column slab.
            j = pl.program_id(1)
            start = pl.multiple_of(j * tn, _LANE)
            b = b_ref[:, pl.ds(start, tn)]
        else:
            b = b_ref[...]
        # One whole-K MXU dot per tile; rank is small so no accumulator needed.
        o_ref[...] = jnp.dot(
            a_ref[...], b, preferred_element_type=jnp.float32
        ).astype(o_ref.dtype)
    return kernel


@jax.jit
def lowrank_matmul(a: jax.Array, b: jax.Array) -> jax.Array:
    """Compute a @ b (a: (M, K), b: (K, N)) with a tiled Pallas TPU kernel."""
    M, K = a.shape
    K2, N = b.shape
    assert K == K2, f"inner dims mismatch: {K} vs {K2}"
    a = a.astype(jnp.float32)
    b = b.astype(jnp.float32)

    tm, tn, b_resident, out_bufs = _plan(M, N, K)
    grid = (pl.cdiv(M, tm), pl.cdiv(N, tn))
    n_steps = grid[0] * grid[1]
    slice_b = b_resident and tn < N

    # A: row-block i only; K kept whole. Ragged last row block reads past M —
    # benign: Pallas pads the block and those output rows are masked on store.
    a_spec = pl.BlockSpec((tm, K), lambda i, j: (i, 0))
    if b_resident:
        # Constant block index -> whole B stays VMEM-resident, fetched once.
        b_spec = pl.BlockSpec((K, N), lambda i, j: (0, 0))
    else:
        b_spec = pl.BlockSpec((K, tn), lambda i, j: (0, j))

    out_spec_args = ((tm, tn), lambda i, j: (i, j))
    if out_bufs > 2 and n_steps >= out_bufs:
        try:
            out_spec = pl.BlockSpec(*out_spec_args,
                                    pipeline_mode=pl.Buffered(out_bufs))
        except (TypeError, AttributeError):
            out_bufs = 2
            out_spec = pl.BlockSpec(*out_spec_args)
    else:
        out_bufs = min(out_bufs, 2)
        out_spec = pl.BlockSpec(*out_spec_args)

    vmem_need = (2 * _vmem_tile_bytes(tm, K)
                 + 2 * (_vmem_tile_bytes(K, N) if b_resident
                        else _vmem_tile_bytes(K, tn))
                 + out_bufs * _vmem_tile_bytes(tm, tn))
    # Size the scoped VMEM limit to actual need + headroom; cap well under the
    # v7x physical 64 MiB so Mosaic internals always have room.
    vmem_limit = int(min(max(vmem_need + (4 << 20), 8 << 20), 32 << 20))

    cost = pl.CostEstimate(
        flops=2 * M * N * K,
        bytes_accessed=_ITEM * (M * N + M * K + K * N),
        transcendentals=0,
    )

    return pl.pallas_call(
        _make_kernel(tn, slice_b),
        out_shape=jax.ShapeDtypeStruct((M, N), jnp.float32),
        grid_spec=pltpu.PrefetchScalarGridSpec(
            num_scalar_prefetch=0,
            grid=grid,
            in_specs=[a_spec, b_spec],
            out_specs=out_spec,
        ),
        compiler_params=pltpu.CompilerParams(
            dimension_semantics=("parallel", "parallel"),
            vmem_limit_bytes=vmem_limit,
        ),
        cost_estimate=cost,
    )(a, b)


class LowRankMatrixDecompositionGNetPallas:
    """JAX/Pallas equivalent of the PyTorch LowRankMatrixDecompositionGNet."""

    def __init__(self, sizes, rank: int = 32, *, key=None):
        self.sizes = tuple(sizes)
        self.rank = rank
        # Present on the torch module but never applied in forward(); kept only
        # for attribute parity (if it were applied, it would be fused into the
        # kernel epilogue rather than added as a separate XLA op).
        self.output_scale = jnp.asarray(1.0, dtype=jnp.float32)
        if key is None:
            key = jax.random.PRNGKey(0)
        k_a, k_b = jax.random.split(key)
        # torch.randn -> standard normal, float32
        self.A = jax.random.normal(k_a, (self.sizes[1], rank), dtype=jnp.float32)
        self.B = jax.random.normal(k_b, (rank, self.sizes[0]), dtype=jnp.float32)

    def __call__(self, x):
        del x  # forward() ignores its input, exactly like the torch module
        return lowrank_matmul(self.A, self.B)


if __name__ == "__main__":
    key = jax.random.PRNGKey(0)
    k1, k2, k3, kx = jax.random.split(key, 4)

    def check(model):
        x = jax.random.normal(kx, (2, model.sizes[0]), dtype=jnp.float32)
        out = jax.block_until_ready(model(x))
        ref = model.A @ model.B
        assert out.shape == (model.sizes[1], model.sizes[0])
        assert out.dtype == jnp.float32
        assert jnp.allclose(out, ref, atol=1e-4, rtol=1e-5), \
            float(jnp.abs(out - ref).max())

    # Case 1: small, module-consistent shapes -> single full-array block.
    # sizes=(in, out): A (256, 32), B (32, 128), out (256, 128).
    check(LowRankMatrixDecompositionGNetPallas((128, 256), rank=32, key=k1))

    # Case 2: non-divisible row count (520) -> single edge-free block (tm=520),
    # no ragged/masked stores.
    check(LowRankMatrixDecompositionGNetPallas((384, 520), rank=16, key=k2))

    # Case 3: exercises the tiled path: ragged row blocks, VMEM-resident B with
    # in-kernel column slicing, and the triple-buffered output pipeline.
    check(LowRankMatrixDecompositionGNetPallas((2304, 1040), rank=32, key=k3))

    print("KERNEL_OK")
</pallas_src>

<mosaic_0001>
module attributes {stable_mosaic.version = 11 : i64} {
  func.func @kernel(%arg0: i32, %arg1: i32, %arg2: memref<256x32xf32, #tpu.memory_space<vmem>>, %arg3: memref<32x128xf32, #tpu.memory_space<vmem>>, %arg4: memref<256x128xf32, #tpu.memory_space<vmem>>) attributes {dimension_semantics = [#tpu.dimension_semantics<parallel>, #tpu.dimension_semantics<parallel>], iteration_bounds = array<i64: 1, 1>, scalar_prefetch = 0 : i64, scratch_operands = 0 : i64, tpu.core_type = #tpu.core_type<tc>, window_params = [{transform_indices = @transform_0, window_bounds = array<i64: 256, 32>}, {pipeline_mode = #tpu.pipeline_mode<synchronous>, transform_indices = @transform_1, window_bounds = array<i64: 32, 128>}, {transform_indices = @transform_2, window_bounds = array<i64: 256, 128>}]} {
    %c0 = arith.constant 0 : index
    %c0_0 = arith.constant 0 : index
    %0 = vector.load %arg3[%c0, %c0_0] : memref<32x128xf32, #tpu.memory_space<vmem>>, vector<32x128xf32>
    %c0_1 = arith.constant 0 : index
    %c0_2 = arith.constant 0 : index
    %1 = vector.load %arg2[%c0_1, %c0_2] : memref<256x32xf32, #tpu.memory_space<vmem>>, vector<256x32xf32>
    %cst = arith.constant dense<0.000000e+00> : vector<256x128xf32>
    %2 = tpu.matmul %1, %0, %cst {dimension_numbers = #tpu.dot_dimension_numbers<[1], [0], [0], [1], [0, 0, 1, 1], [], []>} : vector<256x32xf32>, vector<32x128xf32>, vector<256x128xf32> -> vector<256x128xf32>
    %c0_3 = arith.constant 0 : index
    %c0_4 = arith.constant 0 : index
    %3 = vector.load %arg4[%c0_3, %c0_4] : memref<256x128xf32, #tpu.memory_space<vmem>>, vector<256x128xf32>
    tpu.vector_store %arg4[%c0_3, %c0_4], %2 {strides = array<i32>} : memref<256x128xf32, #tpu.memory_space<vmem>>, vector<256x128xf32>,
    return
  }
  func.func @transform_0(%arg0: i32, %arg1: i32) -> (i32, i32) {
    %c0_i32 = arith.constant 0 : i32
    %c0_i32_0 = arith.constant 0 : i32
    return %arg0, %c0_i32 : i32, i32
  }
  func.func @transform_1(%arg0: i32, %arg1: i32) -> (i32, i32) {
    %c0_i32 = arith.constant 0 : i32
    %c0_i32_0 = arith.constant 0 : i32
    %c0_i32_1 = arith.constant 0 : i32
    return %c0_i32, %c0_i32_0 : i32, i32
  }
  func.func @transform_2(%arg0: i32, %arg1: i32) -> (i32, i32) {
    %c0_i32 = arith.constant 0 : i32
    return %arg0, %arg1 : i32, i32
  }
}

</mosaic_0001>

<llo_original>
// kernel: lowrank_matmul.1
$region0: #{lowrank_matmul.1}
  #allocation0 [shape = 'u32[]', space=smem, size = 0x4, offset = 0x4, fixed_abs, tag = 'smem constant byte address 0x4 - core index']
  #allocation1 [shape = 'u32[144,128]{1,0:T(1,128)}', space=vmem, size = 0x12000, scoped, tag = 'internal scratch']
  %s0 = inlined_call_operand.vmem [shape: f32[256,32], index: 0, kind: input, shape index: {}]
  %s1 = inlined_call_operand.vmem [shape: f32[32,128], index: 1, kind: input, shape index: {}]
  %s2 = inlined_call_operand.hbm [shape: f32[256,128], index: 2, kind: output, shape index: {}]
  %s3 = sld [smem:[#allocation0]]
  $region18: #{lowrank_matmul.1} parent=0
    _
  %s5 = ssub.s32 1, %s3
  %s6 = scalar_select 0, %s5, %s3
  $region1: #{lowrank_matmul.1} parent=0
    #allocation2 [shape = 'u8[131072]{0}', space=vmem, size = 0x20000, scoped, tag = 'output window, operand 0, single buffered']
    #allocation3 [shape = 's32[1]{0}', space=sflag, size = 0x4, scoped, tag = 'scoped memory for lowrank_matmul.1']
    %7 = vsyncpa [#allocation3], 0
    // Predicated region
    $region2: #{lowrank_matmul.1} parent=1 // pred_check
      _
    $region3: #{lowrank_matmul.1} parent=1 // pred_check_branch
      %9 = sbr.rel (0) target = $region5
    $region4: #{lowrank_matmul.1} parent=1 // pred_region
      _
    $region5: #{lowrank_matmul.1} parent=1 // pred_fallthru
      _
    // Predicated region
    $region6: #{lowrank_matmul.1} parent=1 // pred_check
      _
    $region7: #{lowrank_matmul.1} parent=1 // pred_check_branch
      %11 = sbr.rel (0) target = $region9
    $region8: #{lowrank_matmul.1} parent=1 // pred_region
      _
    $region9: #{lowrank_matmul.1} parent=1 // pred_fallthru
      _
    %v12 = vld [vmem:[%s1] sm:$0xff]
    %v13 = vld [vmem:[%s1 + $0x8] sm:$0xff]
    %v14 = vld [vmem:[%s1 + $0x10] sm:$0xff]
    %v15 = vld [vmem:[%s1 + $0x18] sm:$0xff]
    %v16 = vld [vmem:[%s0] sm:$0xff]
    %v17 = vld [vmem:[%s0 + $0x8] sm:$0xff]
    %v18 = vld [vmem:[%s0 + $0x10] sm:$0xff]
    %v19 = vld [vmem:[%s0 + $0x18] sm:$0xff]
    %v20 = vld [vmem:[%s0 + $0x20] sm:$0xff]
    %v21 = vld [vmem:[%s0 + $0x28] sm:$0xff]
    %v22 = vld [vmem:[%s0 + $0x30] sm:$0xff]
    %v23 = vld [vmem:[%s0 + $0x38] sm:$0xff]
    %v24 = vld [vmem:[%s0 + $0x40] sm:$0xff]
    %v25 = vld [vmem:[%s0 + $0x48] sm:$0xff]
    %v26 = vld [vmem:[%s0 + $0x50] sm:$0xff]
    %v27 = vld [vmem:[%s0 + $0x58] sm:$0xff]
    %v28 = vld [vmem:[%s0 + $0x60] sm:$0xff]
    %v29 = vld [vmem:[%s0 + $0x68] sm:$0xff]
    %v30 = vld [vmem:[%s0 + $0x70] sm:$0xff]
    %v31 = vld [vmem:[%s0 + $0x78] sm:$0xff]
    %v32 = vld [vmem:[%s0 + $0x80] sm:$0xff]
    %v33 = vld [vmem:[%s0 + $0x88] sm:$0xff]
    %v34 = vld [vmem:[%s0 + $0x90] sm:$0xff]
    %v35 = vld [vmem:[%s0 + $0x98] sm:$0xff]
    %v36 = vld [vmem:[%s0 + $0xa0] sm:$0xff]
    %v37 = vld [vmem:[%s0 + $0xa8] sm:$0xff]
    %v38 = vld [vmem:[%s0 + $0xb0] sm:$0xff]
    %v39 = vld [vmem:[%s0 + $0xb8] sm:$0xff]
    %v40 = vld [vmem:[%s0 + $0xc0] sm:$0xff]
    %v41 = vld [vmem:[%s0 + $0xc8] sm:$0xff]
    %v42 = vld [vmem:[%s0 + $0xd0] sm:$0xff]
    %v43 = vld [vmem:[%s0 + $0xd8] sm:$0xff]
    %v44 = vld [vmem:[%s0 + $0xe0] sm:$0xff]
    %v45 = vld [vmem:[%s0 + $0xe8] sm:$0xff]
    %v46 = vld [vmem:[%s0 + $0xf0] sm:$0xff]
    %v47 = vld [vmem:[%s0 + $0xf8] sm:$0xff]
    %vm48 = vcmask 261120
    %v50 = vsel %vm48, %v16, 0
    %v53 = vsel %vm48, %v17, 0
    %v56 = vsel %vm48, %v18, 0
    %v59 = vsel %vm48, %v19, 0
    %v62 = vsel %vm48, %v20, 0
    %v65 = vsel %vm48, %v21, 0
    %v68 = vsel %vm48, %v22, 0
    %v71 = vsel %vm48, %v23, 0
    %v74 = vsel %vm48, %v24, 0
    %v77 = vsel %vm48, %v25, 0
    %v80 = vsel %vm48, %v26, 0
    %v83 = vsel %vm48, %v27, 0
    %v86 = vsel %vm48, %v28, 0
    %v89 = vsel %vm48, %v29, 0
    %v92 = vsel %vm48, %v30, 0
    %v95 = vsel %vm48, %v31, 0
    %v98 = vsel %vm48, %v32, 0
    %v101 = vsel %vm48, %v33, 0
    %v104 = vsel %vm48, %v34, 0
    %v107 = vsel %vm48, %v35, 0
    %v110 = vsel %vm48, %v36, 0
    %v113 = vsel %vm48, %v37, 0
    %v116 = vsel %vm48, %v38, 0
    %v119 = vsel %vm48, %v39, 0
    %v122 = vsel %vm48, %v40, 0
    %v125 = vsel %vm48, %v41, 0
    %v128 = vsel %vm48, %v42, 0
    %v131 = vsel %vm48, %v43, 0
    %v134 = vsel %vm48, %v44, 0
    %v137 = vsel %vm48, %v45, 0
    %v140 = vsel %vm48, %v46, 0
    %v143 = vsel %vm48, %v47, 0
    %145 = vmatprep.subr.mxu0 0.0
    %146 = vmatpush1.msra.mxu0 %v12
    %147 = vmatprep.subr.mxu0 0.0
    %148 = vmatpush1.msra.mxu0 %v13
    %149 = vmatprep.subr.mxu0 0.0
    %150 = vmatpush1.msra.mxu0 %v14
    %151 = vmatprep.subr.mxu0 0.0
    %152 = vmatpush1.msra.mxu0 %v15
    %153 = vmatprep.subr.mxu0 0.0
    %154 = vmatpush1.msra.mxu0 0.0
    %155 = vmatprep.subr.mxu0 0.0
    %156 = vmatpush1.msra.mxu0 0.0
    %157 = vmatprep.subr.mxu0 0.0
    %158 = vmatpush1.msra.mxu0 0.0
    %159 = vmatprep.subr.mxu0 0.0
    %160 = vmatpush1.msra.mxu0 0.0
    %161 = vmatprep.subr.mxu0 0.0
    %162 = vmatpush1.msra.mxu0 0.0
    %163 = vmatprep.subr.mxu0 0.0
    %164 = vmatpush1.msra.mxu0 0.0
    %165 = vmatprep.subr.mxu0 0.0
    %166 = vmatpush1.msra.mxu0 0.0
    %167 = vmatprep.subr.mxu0 0.0
    %168 = vmatpush1.msra.mxu0 0.0
    %169 = vmatprep.subr.mxu0 0.0
    %170 = vmatpush1.msra.mxu0 0.0
    %171 = vmatprep.subr.mxu0 0.0
    %172 = vmatpush1.msra.mxu0 0.0
    %173 = vmatprep.subr.mxu0 0.0
    %174 = vmatpush1.msra.mxu0 0.0
    %175 = vmatprep.subr.mxu0 0.0
    %176 = vmatpush1.msra.mxu0 0.0
    %177 = vmatprep.subr.mxu0 0.0
    %178 = vmatpush1.msra.mxu0 0.0
    %179 = vmatprep.subr.mxu0 0.0
    %180 = vmatpush1.msra.mxu0 0.0
    %181 = vmatprep.subr.mxu0 0.0
    %182 = vmatpush1.msra.mxu0 0.0
    %183 = vmatprep.subr.mxu0 0.0
    %184 = vmatpush1.msra.mxu0 0.0
    %185 = vmatprep.subr.mxu0 0.0
    %186 = vmatpush1.msra.mxu0 0.0
    %187 = vmatprep.subr.mxu0 0.0
    %188 = vmatpush1.msra.mxu0 0.0
    %189 = vmatprep.subr.mxu0 0.0
    %190 = vmatpush1.msra.mxu0 0.0
    %191 = vmatprep.subr.mxu0 0.0
    %192 = vmatpush1.msra.mxu0 0.0
    %193 = vmatprep.subr.mxu0 0.0
    %194 = vmatpush1.msra.mxu0 0.0
    %195 = vmatprep.subr.mxu0 0.0
    %196 = vmatpush1.msra.mxu0 0.0
    %197 = vmatprep.subr.mxu0 0.0
    %198 = vmatpush1.msra.mxu0 0.0
    %199 = vmatprep.subr.mxu0 0.0
    %200 = vmatpush1.msra.mxu0 0.0
    %201 = vmatprep.subr.mxu0 0.0
    %202 = vmatpush1.msra.mxu0 0.0
    %203 = vmatprep.subr.mxu0 0.0
    %204 = vmatpush1.msra.mxu0 0.0
    %205 = vmatprep.subr.mxu0 0.0
    %206 = vmatpush1.msra.mxu0 0.0
    %207 = vmatprep.subr.mxu0 0.0
    %208 = vmatpush1.msra.mxu0 0.0
    %209 = vmatprep.mubr.f32.mxu0 0.0
    %210 = vmatmul.mubr.f32.gmra.mrb[0].mxu0 %v50
    %v211 = vpop.f32.mrb[0].mxu0
    %v212 = vadd.f32 0.0, %v211
    %v213 = vpop.f32.mrb[0].mxu0
    %214 = vmatprep.mubr.f32.mxu0 0.0
    %215 = vmatmul.mubr.f32.gmra.mrb[0].mxu0 %v53
    %v216 = vpop.f32.mrb[0].mxu0
    %v217 = vadd.f32 0.0, %v216
    %v218 = vpop.f32.mrb[0].mxu0
    %219 = vmatprep.mubr.f32.mxu0 0.0
    %220 = vmatmul.mubr.f32.gmra.mrb[0].mxu0 %v56
    %v221 = vpop.f32.mrb[0].mxu0
    %v222 = vadd.f32 0.0, %v221
    %v223 = vpop.f32.mrb[0].mxu0
    %224 = vmatprep.mubr.f32.mxu0 0.0
    %225 = vmatmul.mubr.f32.gmra.mrb[0].mxu0 %v59
    %v226 = vpop.f32.mrb[0].mxu0
    %v227 = vadd.f32 0.0, %v226
    %v228 = vpop.f32.mrb[0].mxu0
    %229 = vmatprep.mubr.f32.mxu0 0.0
    %230 = vmatmul.mubr.f32.gmra.mrb[0].mxu0 %v62
    %v231 = vpop.f32.mrb[0].mxu0
    %v232 = vadd.f32 0.0, %v231
    %v233 = vpop.f32.mrb[0].mxu0
    %234 = vmatprep.mubr.f32.mxu0 0.0
    %235 = vmatmul.mubr.f32.gmra.mrb[0].mxu0 %v65
    %v236 = vpop.f32.mrb[0].mxu0
    %v237 = vadd.f32 0.0, %v236
    %v238 = vpop.f32.mrb[0].mxu0
    %239 = vmatprep.mubr.f32.mxu0 0.0
    %240 = vmatmul.mubr.f32.gmra.mrb[0].mxu0 %v68
    %v241 = vpop.f32.mrb[0].mxu0
    %v242 = vadd.f32 0.0, %v241
    %v243 = vpop.f32.mrb[0].mxu0
    %244 = vmatprep.mubr.f32.mxu0 0.0
    %245 = vmatmul.mubr.f32.gmra.mrb[0].mxu0 %v71
    %v246 = vpop.f32.mrb[0].mxu0
    %v247 = vadd.f32 0.0, %v246
    %v248 = vpop.f32.mrb[0].mxu0
    %249 = vmatprep.mubr.f32.mxu0 0.0
    %250 = vmatmul.mubr.f32.gmra.mrb[0].mxu0 %v74
    %v251 = vpop.f32.mrb[0].mxu0
    %v252 = vadd.f32 0.0, %v251
    %v253 = vpop.f32.mrb[0].mxu0
    %254 = vmatprep.mubr.f32.mxu0 0.0
    %255 = vmatmul.mubr.f32.gmra.mrb[0].mxu0 %v77
    %v256 = vpop.f32.mrb[0].mxu0
    %v257 = vadd.f32 0.0, %v256
    %v258 = vpop.f32.mrb[0].mxu0
    %259 = vmatprep.mubr.f32.mxu0 0.0
    %260 = vmatmul.mubr.f32.gmra.mrb[0].mxu0 %v80
    %v261 = vpop.f32.mrb[0].mxu0
    %v262 = vadd.f32 0.0, %v261
    %v263 = vpop.f32.mrb[0].mxu0
    %264 = vmatprep.mubr.f32.mxu0 0.0
    %265 = vmatmul.mubr.f32.gmra.mrb[0].mxu0 %v83
    %v266 = vpop.f32.mrb[0].mxu0
    %v267 = vadd.f32 0.0, %v266
    %v268 = vpop.f32.mrb[0].mxu0
    %269 = vmatprep.mubr.f32.mxu0 0.0
    %270 = vmatmul.mubr.f32.gmra.mrb[0].mxu0 %v86
    %v271 = vpop.f32.mrb[0].mxu0
    %v272 = vadd.f32 0.0, %v271
    %v273 = vpop.f32.mrb[0].mxu0
    %274 = vmatprep.mubr.f32.mxu0 0.0
    %275 = vmatmul.mubr.f32.gmra.mrb[0].mxu0 %v89
    %v276 = vpop.f32.mrb[0].mxu0
    %v277 = vadd.f32 0.0, %v276
    %v278 = vpop.f32.mrb[0].mxu0
    %279 = vmatprep.mubr.f32.mxu0 0.0
    %280 = vmatmul.mubr.f32.gmra.mrb[0].mxu0 %v92
    %v281 = vpop.f32.mrb[0].mxu0
    %v282 = vadd.f32 0.0, %v281
    %v283 = vpop.f32.mrb[0].mxu0
    %284 = vmatprep.mubr.f32.mxu0 0.0
    %285 = vmatmul.mubr.f32.gmra.mrb[0].mxu0 %v95
    %v286 = vpop.f32.mrb[0].mxu0
    %v287 = vadd.f32 0.0, %v286
    %v288 = vpop.f32.mrb[0].mxu0
    %289 = vmatprep.mubr.f32.mxu0 0.0
    %290 = vmatmul.mubr.f32.gmra.mrb[0].mxu0 %v98
    %v291 = vpop.f32.mrb[0].mxu0
    %v292 = vadd.f32 0.0, %v291
    %v293 = vpop.f32.mrb[0].mxu0
    %294 = vmatprep.mubr.f32.mxu0 0.0
    %295 = vmatmul.mubr.f32.gmra.mrb[0].mxu0 %v101
    %v296 = vpop.f32.mrb[0].mxu0
    %v297 = vadd.f32 0.0, %v296
    %v298 = vpop.f32.mrb[0].mxu0
    %299 = vmatprep.mubr.f32.mxu0 0.0
    %300 = vmatmul.mubr.f32.gmra.mrb[0].mxu0 %v104
    %v301 = vpop.f32.mrb[0].mxu0
    %v302 = vadd.f32 0.0, %v301
    %v303 = vpop.f32.mrb[0].mxu0
    %304 = vmatprep.mubr.f32.mxu0 0.0
    %305 = vmatmul.mubr.f32.gmra.mrb[0].mxu0 %v107
    %v306 = vpop.f32.mrb[0].mxu0
    %v307 = vadd.f32 0.0, %v306
    %v308 = vpop.f32.mrb[0].mxu0
    %309 = vmatprep.mubr.f32.mxu0 0.0
    %310 = vmatmul.mubr.f32.gmra.mrb[0].mxu0 %v110
    %v311 = vpop.f32.mrb[0].mxu0
    %v312 = vadd.f32 0.0, %v311
    %v313 = vpop.f32.mrb[0].mxu0
    %314 = vmatprep.mubr.f32.mxu0 0.0
    %315 = vmatmul.mubr.f32.gmra.mrb[0].mxu0 %v113
    %v316 = vpop.f32.mrb[0].mxu0
    %v317 = vadd.f32 0.0, %v316
    %v318 = vpop.f32.mrb[0].mxu0
    %319 = vmatprep.mubr.f32.mxu0 0.0
    %320 = vmatmul.mubr.f32.gmra.mrb[0].mxu0 %v116
    %v321 = vpop.f32.mrb[0].mxu0
    %v322 = vadd.f32 0.0, %v321
    %v323 = vpop.f32.mrb[0].mxu0
    %324 = vmatprep.mubr.f32.mxu0 0.0
    %325 = vmatmul.mubr.f32.gmra.mrb[0].mxu0 %v119
    %v326 = vpop.f32.mrb[0].mxu0
    %v327 = vadd.f32 0.0, %v326
    %v328 = vpop.f32.mrb[0].mxu0
    %329 = vmatprep.mubr.f32.mxu0 0.0
    %330 = vmatmul.mubr.f32.gmra.mrb[0].mxu0 %v122
    %v331 = vpop.f32.mrb[0].mxu0
    %v332 = vadd.f32 0.0, %v331
    %v333 = vpop.f32.mrb[0].mxu0
    %334 = vmatprep.mubr.f32.mxu0 0.0
    %335 = vmatmul.mubr.f32.gmra.mrb[0].mxu0 %v125
    %v336 = vpop.f32.mrb[0].mxu0
    %v337 = vadd.f32 0.0, %v336
    %v338 = vpop.f32.mrb[0].mxu0
    %339 = vmatprep.mubr.f32.mxu0 0.0
    %340 = vmatmul.mubr.f32.gmra.mrb[0].mxu0 %v128
    %v341 = vpop.f32.mrb[0].mxu0
    %v342 = vadd.f32 0.0, %v341
    %v343 = vpop.f32.mrb[0].mxu0
    %344 = vmatprep.mubr.f32.mxu0 0.0
    %345 = vmatmul.mubr.f32.gmra.mrb[0].mxu0 %v131
    %v346 = vpop.f32.mrb[0].mxu0
    %v347 = vadd.f32 0.0, %v346
    %v348 = vpop.f32.mrb[0].mxu0
    %349 = vmatprep.mubr.f32.mxu0 0.0
    %350 = vmatmul.mubr.f32.gmra.mrb[0].mxu0 %v134
    %v351 = vpop.f32.mrb[0].mxu0
    %v352 = vadd.f32 0.0, %v351
    %v353 = vpop.f32.mrb[0].mxu0
    %354 = vmatprep.mubr.f32.mxu0 0.0
    %355 = vmatmul.mubr.f32.gmra.mrb[0].mxu0 %v137
    %v356 = vpop.f32.mrb[0].mxu0
    %v357 = vadd.f32 0.0, %v356
    %v358 = vpop.f32.mrb[0].mxu0
    %359 = vmatprep.mubr.f32.mxu0 0.0
    %360 = vmatmul.mubr.f32.gmra.mrb[0].mxu0 %v140
    %v361 = vpop.f32.mrb[0].mxu0
    %v362 = vadd.f32 0.0, %v361
    %v363 = vpop.f32.mrb[0].mxu0
    %364 = vmatprep.mubr.f32.mxu0 0.0
    %365 = vmatmul.mubr.f32.gmra.mrb[0].mxu0 %v143
    %v366 = vpop.f32.mrb[0].mxu0
    %v367 = vadd.f32 0.0, %v366
    %v368 = vpop.f32.mrb[0].mxu0
    %369 = vdwg.mxu0
    %370 = vst [vmem:[#allocation2] sm:$0xff] %v212
    %371 = vst [vmem:[#allocation2 + $0x8] sm:$0xff] %v217
    %372 = vst [vmem:[#allocation2 + $0x10] sm:$0xff] %v222
    %373 = vst [vmem:[#allocation2 + $0x18] sm:$0xff] %v227
    %374 = vst [vmem:[#allocation2 + $0x20] sm:$0xff] %v232
    %375 = vst [vmem:[#allocation2 + $0x28] sm:$0xff] %v237
    %376 = vst [vmem:[#allocation2 + $0x30] sm:$0xff] %v242
    %377 = vst [vmem:[#allocation2 + $0x38] sm:$0xff] %v247
    %378 = vst [vmem:[#allocation2 + $0x40] sm:$0xff] %v252
    %379 = vst [vmem:[#allocation2 + $0x48] sm:$0xff] %v257
    %380 = vst [vmem:[#allocation2 + $0x50] sm:$0xff] %v262
    %381 = vst [vmem:[#allocation2 + $0x58] sm:$0xff] %v267
    %382 = vst [vmem:[#allocation2 + $0x60] sm:$0xff] %v272
    %383 = vst [vmem:[#allocation2 + $0x68] sm:$0xff] %v277
    %384 = vst [vmem:[#allocation2 + $0x70] sm:$0xff] %v282
    %385 = vst [vmem:[#allocation2 + $0x78] sm:$0xff] %v287
    %386 = vst [vmem:[#allocation2 + $0x80] sm:$0xff] %v292
    %387 = vst [vmem:[#allocation2 + $0x88] sm:$0xff] %v297
    %388 = vst [vmem:[#allocation2 + $0x90] sm:$0xff] %v302
    %389 = vst [vmem:[#allocation2 + $0x98] sm:$0xff] %v307
    %390 = vst [vmem:[#allocation2 + $0xa0] sm:$0xff] %v312
    %391 = vst [vmem:[#allocation2 + $0xa8] sm:$0xff] %v317
    %392 = vst [vmem:[#allocation2 + $0xb0] sm:$0xff] %v322
    %393 = vst [vmem:[#allocation2 + $0xb8] sm:$0xff] %v327
    %394 = vst [vmem:[#allocation2 + $0xc0] sm:$0xff] %v332
    %395 = vst [vmem:[#allocation2 + $0xc8] sm:$0xff] %v337
    %396 = vst [vmem:[#allocation2 + $0xd0] sm:$0xff] %v342
    %397 = vst [vmem:[#allocation2 + $0xd8] sm:$0xff] %v347
    %398 = vst [vmem:[#allocation2 + $0xe0] sm:$0xff] %v352
    %399 = vst [vmem:[#allocation2 + $0xe8] sm:$0xff] %v357
    %400 = vst [vmem:[#allocation2 + $0xf0] sm:$0xff] %v362
    %401 = vst [vmem:[#allocation2 + $0xf8] sm:$0xff] %v367
    // Predicated region
    $region10: #{lowrank_matmul.1} parent=1 // pred_check
      _
    $region11: #{lowrank_matmul.1} parent=1 // pred_check_branch
      %403 = sbr.rel (0) target = $region13
    $region12: #{lowrank_matmul.1} parent=1 // pred_region
      %s405 = ssub.s32 4096, 4096
      %406 = vsyncadd [#allocation3], %s405
      %s407 = sshll.u32 [#allocation2], 4
      %s408 = int_to_ptr.vmem [resolvable:$true] %s407
      %413 = dma.vmem_to_hbm [thread:$0]  %s408, 4096, %s2, [#allocation3], 128, 128, 8
    $region13: #{lowrank_matmul.1} parent=1 // pred_fallthru
      _
    // Predicated region
    $region14: #{lowrank_matmul.1} parent=1 // pred_check
      _
    $region15: #{lowrank_matmul.1} parent=1 // pred_check_branch
      %415 = sbr.rel (0) target = $region17
    $region16: #{lowrank_matmul.1} parent=1 // pred_region
      %416 = dma.done [#allocation3], 4096
    $region17: #{lowrank_matmul.1} parent=1 // pred_fallthru
      _
    %417 = vsyncpa [#allocation3], 1

</llo_original>
